<compile_context>
chip_gen: v5e
topology: v5e:2x2
jax: 0.10.0
libtpu: 0.0.40
codegen_flags: <defaults>
</compile_context>

<pallas_src>
import jax
import jax.numpy as jnp
from jax.experimental import pallas as pl
from jax.experimental.pallas import tpu as pltpu


def _conv1x1_bias_relu_kernel(x_ref, w_ref, b_ref, o_ref):
    # x_ref: (Cin, t)   w_ref: (Cout, Cin)   b_ref: (Cout, 1)   o_ref: (Cout, t)
    acc = jnp.dot(w_ref[...], x_ref[...], preferred_element_type=jnp.float32)
    acc = acc + b_ref[...].astype(jnp.float32)   # per-channel bias, lane-broadcast
    o_ref[...] = jnp.maximum(acc, 0.0).astype(o_ref.dtype)


def _choose_spatial_tile(HW, n_batch, t_max):
    """Pick the spatial (lane) tile width.

    * multiple of 128 (lane-dense, unmasked vst) and <= sanitized t_max,
    * a divisor of HW whenever HW % 128 == 0 -> zero partial blocks, no pad/slice,
    * keep >= ~8 total grid steps when possible so v7x's 2 TensorCores each get
      a few steps for DMA/compute overlap.
    """
    t_max = max(128, (int(t_max) // 128) * 128)      # sanitize caller value
    if HW <= 128:
        return HW                                     # full array dim (always legal)
    hi = min(t_max, (HW // 128) * 128)
    if HW % 128 == 0:
        cands = [t for t in range(128, hi + 1, 128) if HW % t == 0]
    else:
        # ragged HW: final partial block is masked by Pallas; any mult-of-128 tile works
        cands = list(range(128, hi + 1, 128))
    good = [t for t in cands if n_batch * ((HW + t - 1) // t) >= 8]
    return max(good) if good else max(cands)


def channel_ops_forward(x, w, b, *, t_hw=2048):
    """ChannelOps.forward: ReLU(Conv2d_1x1(x, w, b)).

    x : (N, Cin, H, W)           NCHW (PyTorch convention), f32 or bf16
    w : (Cout, Cin) or (Cout, Cin, 1, 1)   Conv2d weight
    b : (Cout,)                  Conv2d bias
    returns (N, Cout, H, W) in x.dtype
    """
    N, Cin, H, W = x.shape
    if w.ndim == 4:
        w = w.reshape(w.shape[0], w.shape[1])
    Cout = w.shape[0]
    HW = H * W

    t = _choose_spatial_tile(HW, N, t_hw)
    grid = (N, pl.cdiv(HW, t))

    x3 = x.reshape(N, Cin, HW)          # free reshape, stays NCHW-contiguous
    b2 = b.reshape(Cout, 1)

    itemsize = jnp.dtype(x.dtype).itemsize
    # double-buffered x tile + out tile, plus resident weight/bias buffers
    vmem_needed = 2 * ((Cin + Cout) * t + Cout * Cin + Cout) * itemsize
    vmem_limit = int(min(max(vmem_needed + (8 << 20), 32 << 20), 64 << 20))

    cost = pl.CostEstimate(
        flops=2 * N * Cout * Cin * HW,
        transcendentals=0,
        bytes_accessed=itemsize * (N * Cin * HW + N * Cout * HW + Cout * Cin + Cout),
    )

    y3 = pl.pallas_call(
        _conv1x1_bias_relu_kernel,
        out_shape=jax.ShapeDtypeStruct((N, Cout, HW), x.dtype),
        grid_spec=pltpu.PrefetchScalarGridSpec(
            num_scalar_prefetch=0,
            grid=grid,
            in_specs=[
                pl.BlockSpec((None, Cin, t), lambda n, j: (n, 0, j)),   # x, streamed
                pl.BlockSpec((Cout, Cin), lambda n, j: (0, 0)),         # weight, resident
                pl.BlockSpec((Cout, 1), lambda n, j: (0, 0)),           # bias, resident
            ],
            out_specs=pl.BlockSpec((None, Cout, t), lambda n, j: (n, 0, j)),
        ),
        compiler_params=pltpu.CompilerParams(
            dimension_semantics=("parallel", "parallel"),
            vmem_limit_bytes=vmem_limit,
        ),
        cost_estimate=cost,
    )(x3, w, b2)

    return y3.reshape(N, Cout, H, W)


if __name__ == "__main__":
    key = jax.random.PRNGKey(0)
    kx, kw, kb = jax.random.split(key, 3)

    # Small shapes consistent with the module (dim_out = 2 * dim_in default).
    N, Cin, H, W = 2, 128, 16, 64
    Cout = 2 * Cin
    x = jax.random.normal(kx, (N, Cin, H, W), dtype=jnp.float32)
    w = jax.random.normal(kw, (Cout, Cin), dtype=jnp.float32) * 0.05
    b = jax.random.normal(kb, (Cout,), dtype=jnp.float32) * 0.1

    y = jax.block_until_ready(channel_ops_forward(x, w, b))

    # pure-JAX reference check
    ref = jnp.einsum("nchw,kc->nkhw", x, w) + b[None, :, None, None]
    ref = jnp.maximum(ref, 0.0)
    assert y.shape == (N, Cout, H, W)
    assert jnp.allclose(y, ref, atol=1e-3, rtol=1e-3)

    print("KERNEL_OK")
</pallas_src>

<mosaic_0001>
module attributes {stable_mosaic.version = 11 : i64} {
  func.func @_conv1x1_bias_relu_kernel(%arg0: i32, %arg1: i32, %arg2: memref<1x128x256xf32, #tpu.memory_space<vmem>>, %arg3: memref<256x128xf32, #tpu.memory_space<vmem>>, %arg4: memref<256x1xf32, #tpu.memory_space<vmem>>, %arg5: memref<1x256x256xf32, #tpu.memory_space<vmem>>) attributes {dimension_semantics = [#tpu.dimension_semantics<parallel>, #tpu.dimension_semantics<parallel>], iteration_bounds = array<i64: 2, 4>, scalar_prefetch = 0 : i64, scratch_operands = 0 : i64, tpu.core_type = #tpu.core_type<tc>, window_params = [{transform_indices = @transform_0, window_bounds = array<i64: 1, 128, 256>}, {pipeline_mode = #tpu.pipeline_mode<synchronous>, transform_indices = @transform_1, window_bounds = array<i64: 256, 128>}, {pipeline_mode = #tpu.pipeline_mode<synchronous>, transform_indices = @transform_2, window_bounds = array<i64: 256, 1>}, {transform_indices = @transform_3, window_bounds = array<i64: 1, 256, 256>}]} {
    %c0 = arith.constant 0 : index
    %c0_0 = arith.constant 0 : index
    %0 = vector.load %arg3[%c0, %c0_0] : memref<256x128xf32, #tpu.memory_space<vmem>>, vector<256x128xf32>
    %c0_1 = arith.constant 0 : index
    %c0_2 = arith.constant 0 : index
    %c0_3 = arith.constant 0 : index
    %1 = vector.load %arg2[%c0_1, %c0_2, %c0_3] : memref<1x128x256xf32, #tpu.memory_space<vmem>>, vector<1x128x256xf32>
    %2 = vector.shape_cast %1 : vector<1x128x256xf32> to vector<128x256xf32>
    %cst = arith.constant dense<0.000000e+00> : vector<256x256xf32>
    %3 = tpu.matmul %0, %2, %cst {dimension_numbers = #tpu.dot_dimension_numbers<[1], [0], [0], [1], [0, 0, 1, 1], [], []>} : vector<256x128xf32>, vector<128x256xf32>, vector<256x256xf32> -> vector<256x256xf32>
    %c0_4 = arith.constant 0 : index
    %c0_5 = arith.constant 0 : index
    %4 = vector.load %arg4[%c0_4, %c0_5] : memref<256x1xf32, #tpu.memory_space<vmem>>, vector<256x1xf32>
    %5 = vector.broadcast %4 : vector<256x1xf32> to vector<256x256xf32>
    %6 = arith.addf %3, %5 : vector<256x256xf32>
    %cst_6 = arith.constant 0.000000e+00 : f32
    %7 = vector.broadcast %cst_6 : f32 to vector<256x256xf32>
    %8 = arith.maximumf %6, %7 : vector<256x256xf32>
    %c0_7 = arith.constant 0 : index
    %c0_8 = arith.constant 0 : index
    %c0_9 = arith.constant 0 : index
    %9 = vector.load %arg5[%c0_7, %c0_8, %c0_9] : memref<1x256x256xf32, #tpu.memory_space<vmem>>, vector<1x256x256xf32>
    %10 = vector.shape_cast %9 : vector<1x256x256xf32> to vector<256x256xf32>
    %11 = vector.shape_cast %8 : vector<256x256xf32> to vector<1x256x256xf32>
    tpu.vector_store %arg5[%c0_7, %c0_8, %c0_9], %11 {strides = array<i32>} : memref<1x256x256xf32, #tpu.memory_space<vmem>>, vector<1x256x256xf32>,
    return
  }
  func.func @transform_0(%arg0: i32, %arg1: i32) -> (i32, i32, i32) {
    %c0_i32 = arith.constant 0 : i32
    %c0_i32_0 = arith.constant 0 : i32
    return %arg0, %c0_i32, %arg1 : i32, i32, i32
  }
  func.func @transform_1(%arg0: i32, %arg1: i32) -> (i32, i32) {
    %c0_i32 = arith.constant 0 : i32
    %c0_i32_0 = arith.constant 0 : i32
    %c0_i32_1 = arith.constant 0 : i32
    return %c0_i32, %c0_i32_0 : i32, i32
  }
  func.func @transform_2(%arg0: i32, %arg1: i32) -> (i32, i32) {
    %c0_i32 = arith.constant 0 : i32
    %c0_i32_0 = arith.constant 0 : i32
    %c0_i32_1 = arith.constant 0 : i32
    return %c0_i32, %c0_i32_0 : i32, i32
  }
  func.func @transform_3(%arg0: i32, %arg1: i32) -> (i32, i32, i32) {
    %c0_i32 = arith.constant 0 : i32
    %c0_i32_0 = arith.constant 0 : i32
    return %arg0, %c0_i32, %arg1 : i32, i32, i32
  }
}

</mosaic_0001>

<llo_original>
// kernel: tpu_custom_call.1
$region0: #{tpu_custom_call.1}
  #allocation0 [shape = 'u32[]', space=smem, size = 0x4, offset = 0x4, fixed_abs, tag = 'smem constant byte address 0x4 - core index']
  #allocation1 [shape = 'u32[72,128]{1,0:T(1,128)}', space=vmem, size = 0x9000, scoped, tag = 'internal scratch']
  %s0 = inlined_call_operand.hbm [shape: f32[2,128,1024], index: 0, kind: input, shape index: {}]
  %s1 = inlined_call_operand.hbm [shape: f32[256,128], index: 1, kind: input, shape index: {}]
  %s2 = inlined_call_operand.vmem [shape: f32[256,1], index: 2, kind: input, shape index: {}]
  %s3 = inlined_call_operand.hbm [shape: f32[2,256,1024], index: 3, kind: output, shape index: {}]
  %s4 = sld [smem:[#allocation0]]
  $region53: #{tpu_custom_call.1} parent=0
    _
  %s6 = ssub.s32 1, %s4
  %s7 = scalar_select 0, %s6, %s4
  $region1: #{tpu_custom_call.1} parent=0
    #allocation2 [shape = 'u8[262144]{0}', space=vmem, size = 0x40000, scoped, tag = 'input window, operand 0']
    #allocation3 [shape = 's32[2]{0}', space=sflag, size = 0x8, scoped, tag = 'scoped memory for tpu_custom_call.1']
    #allocation4 [shape = 's32[2]{0}', space=sflag, size = 0x8, scoped, tag = 'scoped memory for tpu_custom_call.1']
    #allocation5 [shape = 'u8[131072]{0}', space=vmem, size = 0x20000, scoped, tag = 'input window, operand 1, single buffered']
    #allocation6 [shape = 's32[1]{0}', space=sflag, size = 0x4, scoped, tag = 'scoped memory for tpu_custom_call.1']
    #allocation7 [shape = 'u8[524288]{0}', space=vmem, size = 0x80000, scoped, tag = 'output window, operand 0']
    %8 = vsyncpa [#allocation3], 0
    %s9 = scalar_lea.sflag [#allocation3], 1
    %10 = vsyncpa %s9, 0
    %11 = vsyncpa [#allocation6], 0
    %12 = vsyncpa [#allocation4], 0
    %s13 = scalar_lea.sflag [#allocation4], 1
    %14 = vsyncpa %s13, 0
    loop: start=0, step=1, limit=10
    $region2: #{tpu_custom_call.1} parent=1 // loop_pre_header
      _
    $region3: #{tpu_custom_call.1} parent=1 // loop_header
      %s16 = sphi 0, %s20
      %p17 = scmp.ge.s32.totalorder %s16, 10
      %s23 = sphi 0, %s35
      %s24 = sphi 0, %s31
      %s25 = sphi 0, %s23
      %s26 = sphi 0, %s24
      %s27 = sphi 0, %s25
      %s28 = sphi 0, %s26
      %s40 = sphi 0, %s42
      %s43 = sphi 0, %s40
      %s44 = sphi 0, %s43
      %s60 = sphi 0, %s44
      %s64 = sphi 0, %s64
      %s66 = sphi 0, %s64
      %s67 = sphi 0, %s66
      %s81 = sphi 0, %s67
      %s85 = sphi 0, %s85
      %s87 = sphi 0, %s85
      %s88 = sphi 0, %s87
      %s102 = sphi 0, %s88
      %s110 = sphi 0, %s112
      %s113 = sphi 0, %s110
      %s114 = sphi 0, %s113
      %s130 = sphi 0, %s114
    $region4: #{tpu_custom_call.1} parent=1 // loop_header_branch
      %19 = sbr.rel (%p17) target = $region8
    $region5: #{tpu_custom_call.1} parent=1 // loop_body
      %s21 = ssub.s32 %s16, 1
      %s22 = ssub.s32 %s16, 2
      %s29 = sadd.s32 1, %s24
      %p30 = scmp.ge.s32.totalorder %s29, 4
      %s31 = scalar_select %p30, 0, %s29
      %s32 = sadd.s32 1, %s23
      %s33 = scalar_select %p30, %s32, %s23
      %p34 = scmp.ge.s32.totalorder %s33, 2
      %s35 = scalar_select %p34, 0, %s33
      %s36 = ssub.s32 %s23, %s35
      %s37 = ssub.s32 %s24, %s31
      %s38 = sor.u32 %s36, %s37
      %p39 = scmp.eq.s32.totalorder %s38, 0
      %s41 = sadd.s32 %s40, 1
      %s42 = scalar_select %p39, %s40, %s41
      %p45 = pneg %p39
      %p46 = scmp.eq.s32.totalorder %s16, 7
      %p47 = por %p45, %p46
      %p48 = scmp.ne.s32.totalorder %s40, %s43
      %p49 = scmp.eq.s32.totalorder %s16, 0
      %p50 = por %p48, %p49
      %p51 = scmp.ne.s32.totalorder %s40, %s43
      %p52 = scmp.eq.s32.totalorder %s21, 7
      %p53 = por %p51, %p52
      %p54 = scmp.ne.s32.totalorder %s43, %s44
      %p55 = scmp.eq.s32.totalorder %s21, 0
      %p56 = por %p54, %p55
      %p57 = scmp.ne.s32.totalorder %s43, %s44
      %p58 = scmp.eq.s32.totalorder %s22, 7
      %p59 = por %p57, %p58
      %p61 = scmp.ne.s32.totalorder %s44, %s60
      %p62 = scmp.eq.s32.totalorder %s22, 0
      %p63 = por %p61, %p62
      %s65 = sadd.s32 %s64, 1
      %p68 = scmp.eq.s32.totalorder %s16, 7
      %p69 = scmp.ne.s32.totalorder %s64, %s66
      %p70 = scmp.eq.s32.totalorder %s16, 0
      %p71 = por %p69, %p70
      %p72 = scmp.ne.s32.totalorder %s64, %s66
      %p73 = scmp.eq.s32.totalorder %s21, 7
      %p74 = por %p72, %p73
      %p75 = scmp.ne.s32.totalorder %s66, %s67
      %p76 = scmp.eq.s32.totalorder %s21, 0
      %p77 = por %p75, %p76
      %p78 = scmp.ne.s32.totalorder %s66, %s67
      %p79 = scmp.eq.s32.totalorder %s22, 7
      %p80 = por %p78, %p79
      %p82 = scmp.ne.s32.totalorder %s67, %s81
      %p83 = scmp.eq.s32.totalorder %s22, 0
      %p84 = por %p82, %p83
      %s86 = sadd.s32 %s85, 1
      %p89 = scmp.eq.s32.totalorder %s16, 7
      %p90 = scmp.ne.s32.totalorder %s85, %s87
      %p91 = scmp.eq.s32.totalorder %s16, 0
      %p92 = por %p90, %p91
      %p93 = scmp.ne.s32.totalorder %s85, %s87
      %p94 = scmp.eq.s32.totalorder %s21, 7
      %p95 = por %p93, %p94
      %p96 = scmp.ne.s32.totalorder %s87, %s88
      %p97 = scmp.eq.s32.totalorder %s21, 0
      %p98 = por %p96, %p97
      %p99 = scmp.ne.s32.totalorder %s87, %s88
      %p100 = scmp.eq.s32.totalorder %s22, 7
      %p101 = por %p99, %p100
      %p103 = scmp.ne.s32.totalorder %s88, %s102
      %p104 = scmp.eq.s32.totalorder %s22, 0
      %p105 = por %p103, %p104
      %s106 = ssub.s32 %s23, %s35
      %s107 = ssub.s32 %s24, %s31
      %s108 = sor.u32 %s106, %s107
      %p109 = scmp.eq.s32.totalorder %s108, 0
      %s111 = sadd.s32 %s110, 1
      %s112 = scalar_select %p109, %s110, %s111
      %p115 = pneg %p109
      %p116 = scmp.eq.s32.totalorder %s16, 7
      %p117 = por %p115, %p116
      %p118 = scmp.ne.s32.totalorder %s110, %s113
      %p119 = scmp.eq.s32.totalorder %s16, 0
      %p120 = por %p118, %p119
      %p121 = scmp.ne.s32.totalorder %s110, %s113
      %p122 = scmp.eq.s32.totalorder %s21, 7
      %p123 = por %p121, %p122
      %p124 = scmp.ne.s32.totalorder %s113, %s114
      %p125 = scmp.eq.s32.totalorder %s21, 0
      %p126 = por %p124, %p125
      %p127 = scmp.ne.s32.totalorder %s113, %s114
      %p128 = scmp.eq.s32.totalorder %s22, 7
      %p129 = por %p127, %p128
      %p131 = scmp.ne.s32.totalorder %s114, %s130
      %p132 = scmp.eq.s32.totalorder %s22, 0
      %p133 = por %p131, %p132
      %p134 = scmp.le.s32.totalorder 1, %s16
      %p135 = scmp.lt.s32.totalorder %s16, 9
      %p136 = pnand %p134, %p135
      %p137 = pneg %p136
      // Predicated region
      $region9: #{tpu_custom_call.1} parent=5 // pred_check
        _
      $region10: #{tpu_custom_call.1} parent=5 // pred_check_branch
        %139 = sbr.rel (%p136) target = $region12
      $region11: #{tpu_custom_call.1} parent=5 // pred_region
        %s140 = ssub.s32 %s16, 1
        // Predicated region
        $region13: #{tpu_custom_call.1} parent=11 // pred_check
          %p141 = pneg %p77
        $region14: #{tpu_custom_call.1} parent=11 // pred_check_branch
          %143 = sbr.rel (%p141) target = $region16
        $region15: #{tpu_custom_call.1} parent=11 // pred_region
          %145 = vsyncadd [#allocation6], 0
          %s146 = sshll.u32 %s1, 4
          %s147 = int_to_ptr.hbm [resolvable:$true] %s146
          %s148 = sshll.u32 [#allocation5], 4
          %s149 = int_to_ptr.vmem [resolvable:$true] %s148
          %154 = dma.hbm_to_vmem [thread:$0]  %s147, 4096, %s149, [#allocation6], 128, 128, 8
        $region16: #{tpu_custom_call.1} parent=11 // pred_fallthru
          _
        // Predicated region
        $region17: #{tpu_custom_call.1} parent=11 // pred_check
          %p155 = pneg %p98
        $region18: #{tpu_custom_call.1} parent=11 // pred_check_branch
          %157 = sbr.rel (%p155) target = $region20
        $region19: #{tpu_custom_call.1} parent=11 // pred_region
          _
        $region20: #{tpu_custom_call.1} parent=11 // pred_fallthru
          _
      $region12: #{tpu_custom_call.1} parent=5 // pred_fallthru
        _
      %p158 = scmp.lt.s32.totalorder %s16, 8
      // Predicated region
      $region21: #{tpu_custom_call.1} parent=5 // pred_check
        %p159 = pneg %p158
      $region22: #{tpu_custom_call.1} parent=5 // pred_check_branch
        %161 = sbr.rel (%p159) target = $region24
      $region23: #{tpu_custom_call.1} parent=5 // pred_region
        // Predicated region
        $region25: #{tpu_custom_call.1} parent=23 // pred_check
          %p162 = pneg %p50
        $region26: #{tpu_custom_call.1} parent=23 // pred_check_branch
          %164 = sbr.rel (%p162) target = $region28
        $region27: #{tpu_custom_call.1} parent=23 // pred_region
          %s165 = sand.u32 %s40, 1
          %s166 = scalar_lea.sflag [#allocation3], %s165
          %s167 = sand.u32 %s40, 1
          %s168 = smul.addr %s167, 256
          %s169 = scalar_lea.vmem [#allocation2], %s168
          %s170 = smul.u32 2, %s24
          %172 = vsyncadd %s166, 0
          %s173 = smul.addr %s23, 128
          %s174 = sadd.s32 %s170, %s173
          %s175 = smul.addr %s174, 8
          %s176 = scalar_lea.hbm %s0, %s175
          %s177 = sshll.u32 %s176, 4
          %s178 = int_to_ptr.hbm [resolvable:$true] %s177
          %s179 = sshll.u32 %s169, 4
          %s180 = int_to_ptr.vmem [resolvable:$true] %s179
          %185 = dma.hbm_to_vmem [thread:$0]  %s178, 4096, %s180, %s166, 1024, 256, 16
        $region28: #{tpu_custom_call.1} parent=23 // pred_fallthru
          _
      $region24: #{tpu_custom_call.1} parent=5 // pred_fallthru
        _
      %p186 = scmp.le.s32.totalorder 1, %s16
      %p187 = scmp.lt.s32.totalorder %s16, 9
      %p188 = pnand %p186, %p187
      %p189 = pneg %p188
      // Predicated region
      $region29: #{tpu_custom_call.1} parent=5 // pred_check
        _
      $region30: #{tpu_custom_call.1} parent=5 // pred_check_branch
        %191 = sbr.rel (%p188) target = $region32
      $region31: #{tpu_custom_call.1} parent=5 // pred_region
        %s192 = ssub.s32 %s16, 1
        %s193 = sand.u32 %s43, 1
        %s194 = scalar_lea.sflag [#allocation3], %s193
        %s195 = sand.u32 %s43, 1
        %s196 = smul.addr %s195, 256
        %s197 = scalar_lea.vmem [#allocation2], %s196
        // Predicated region
        $region33: #{tpu_custom_call.1} parent=31 // pred_check
          %p198 = pneg %p56
        $region34: #{tpu_custom_call.1} parent=31 // pred_check_branch
          %200 = sbr.rel (%p198) target = $region36
        $region35: #{tpu_custom_call.1} parent=31 // pred_region
          %202 = dma.done %s194, 4096
        $region36: #{tpu_custom_call.1} parent=31 // pred_fallthru
          _
        // Predicated region
        $region37: #{tpu_custom_call.1} parent=31 // pred_check
          %p203 = pneg %p77
        $region38: #{tpu_custom_call.1} parent=31 // pred_check_branch
          %205 = sbr.rel (%p203) target = $region40
        $region39: #{tpu_custom_call.1} parent=31 // pred_region
          %207 = dma.done [#allocation6], 4096
        $region40: #{tpu_custom_call.1} parent=31 // pred_fallthru
          _
        %s208 = sand.u32 %s43, 1
        %s209 = scalar_lea.sflag [#allocation3], %s208
        %s210 = sand.u32 %s43, 1
        %s211 = smul.addr %s210, 256
        %s212 = scalar_lea.vmem [#allocation2], %s211
        %p213 = pneg %p56
        %p214 = pneg %p53
        %p215 = pneg %p77
        %p216 = pneg %p74
        %p217 = pneg %p98
        %p218 = pneg %p95
        %p219 = pneg %p126
        %p220 = pneg %p123
        %s221 = sand.u32 %s113, 1
        %s222 = scalar_lea.sflag [#allocation4], %s221
        %s223 = sand.u32 %s113, 1
        %s224 = smul.addr %s223, 512
        %s225 = scalar_lea.vmem [#allocation7], %s224
        %s226 = smul.u32 2, %s26
        %s227 = smul.u32 2, %s26
        %v228 = vld [vmem:[#allocation5] sm:$0xff]
        %v229 = vld [vmem:[#allocation5 + $0x8] sm:$0xff]
        %v230 = vld [vmem:[#allocation5 + $0x10] sm:$0xff]
        %v231 = vld [vmem:[#allocation5 + $0x18] sm:$0xff]
        %v232 = vld [vmem:[#allocation5 + $0x20] sm:$0xff]
        %v233 = vld [vmem:[#allocation5 + $0x28] sm:$0xff]
        %v234 = vld [vmem:[#allocation5 + $0x30] sm:$0xff]
        %v235 = vld [vmem:[#allocation5 + $0x38] sm:$0xff]
        %v236 = vld [vmem:[#allocation5 + $0x40] sm:$0xff]
        %v237 = vld [vmem:[#allocation5 + $0x48] sm:$0xff]
        %v238 = vld [vmem:[#allocation5 + $0x50] sm:$0xff]
        %v239 = vld [vmem:[#allocation5 + $0x58] sm:$0xff]
        %v240 = vld [vmem:[#allocation5 + $0x60] sm:$0xff]
        %v241 = vld [vmem:[#allocation5 + $0x68] sm:$0xff]
        %v242 = vld [vmem:[#allocation5 + $0x70] sm:$0xff]
        %v243 = vld [vmem:[#allocation5 + $0x78] sm:$0xff]
        %v244 = vld [vmem:[#allocation5 + $0x80] sm:$0xff]
        %v245 = vld [vmem:[#allocation5 + $0x88] sm:$0xff]
        %v246 = vld [vmem:[#allocation5 + $0x90] sm:$0xff]
        %v247 = vld [vmem:[#allocation5 + $0x98] sm:$0xff]
        %v248 = vld [vmem:[#allocation5 + $0xa0] sm:$0xff]
        %v249 = vld [vmem:[#allocation5 + $0xa8] sm:$0xff]
        %v250 = vld [vmem:[#allocation5 + $0xb0] sm:$0xff]
        %v251 = vld [vmem:[#allocation5 + $0xb8] sm:$0xff]
        %v252 = vld [vmem:[#allocation5 + $0xc0] sm:$0xff]
        %v253 = vld [vmem:[#allocation5 + $0xc8] sm:$0xff]
        %v254 = vld [vmem:[#allocation5 + $0xd0] sm:$0xff]
        %v255 = vld [vmem:[#allocation5 + $0xd8] sm:$0xff]
        %v256 = vld [vmem:[#allocation5 + $0xe0] sm:$0xff]
        %v257 = vld [vmem:[#allocation5 + $0xe8] sm:$0xff]
        %v258 = vld [vmem:[#allocation5 + $0xf0] sm:$0xff]
        %v259 = vld [vmem:[#allocation5 + $0xf8] sm:$0xff]
        %v260 = vld [vmem:[%s197] sm:$0xff]
        %v261 = vld [vmem:[%s197 + $0x8] sm:$0xff]
        %v262 = vld [vmem:[%s197 + $0x10] sm:$0xff]
        %v263 = vld [vmem:[%s197 + $0x18] sm:$0xff]
        %v264 = vld [vmem:[%s197 + $0x20] sm:$0xff]
        %v265 = vld [vmem:[%s197 + $0x28] sm:$0xff]
        %v266 = vld [vmem:[%s197 + $0x30] sm:$0xff]
        %v267 = vld [vmem:[%s197 + $0x38] sm:$0xff]
        %v268 = vld [vmem:[%s197 + $0x40] sm:$0xff]
        %v269 = vld [vmem:[%s197 + $0x48] sm:$0xff]
        %v270 = vld [vmem:[%s197 + $0x50] sm:$0xff]
        %v271 = vld [vmem:[%s197 + $0x58] sm:$0xff]
        %v272 = vld [vmem:[%s197 + $0x60] sm:$0xff]
        %v273 = vld [vmem:[%s197 + $0x68] sm:$0xff]
        %v274 = vld [vmem:[%s197 + $0x70] sm:$0xff]
        %v275 = vld [vmem:[%s197 + $0x78] sm:$0xff]
        %v276 = vld [vmem:[%s197 + $0x80] sm:$0xff]
        %v277 = vld [vmem:[%s197 + $0x88] sm:$0xff]
        %v278 = vld [vmem:[%s197 + $0x90] sm:$0xff]
        %v279 = vld [vmem:[%s197 + $0x98] sm:$0xff]
        %v280 = vld [vmem:[%s197 + $0xa0] sm:$0xff]
        %v281 = vld [vmem:[%s197 + $0xa8] sm:$0xff]
        %v282 = vld [vmem:[%s197 + $0xb0] sm:$0xff]
        %v283 = vld [vmem:[%s197 + $0xb8] sm:$0xff]
        %v284 = vld [vmem:[%s197 + $0xc0] sm:$0xff]
        %v285 = vld [vmem:[%s197 + $0xc8] sm:$0xff]
        %v286 = vld [vmem:[%s197 + $0xd0] sm:$0xff]
        %v287 = vld [vmem:[%s197 + $0xd8] sm:$0xff]
        %v288 = vld [vmem:[%s197 + $0xe0] sm:$0xff]
        %v289 = vld [vmem:[%s197 + $0xe8] sm:$0xff]
        %v290 = vld [vmem:[%s197 + $0xf0] sm:$0xff]
        %v291 = vld [vmem:[%s197 + $0xf8] sm:$0xff]
        %v292 = vld [vmem:[%s2] sm:$0xff]
        %v293 = vld [vmem:[%s2 + $0x8] sm:$0xff]
        %v294 = vld [vmem:[%s2 + $0x10] sm:$0xff]
        %v295 = vld [vmem:[%s2 + $0x18] sm:$0xff]
        %v296 = vld [vmem:[%s2 + $0x20] sm:$0xff]
        %v297 = vld [vmem:[%s2 + $0x28] sm:$0xff]
        %v298 = vld [vmem:[%s2 + $0x30] sm:$0xff]
        %v299 = vld [vmem:[%s2 + $0x38] sm:$0xff]
        %v300 = vld [vmem:[%s2 + $0x40] sm:$0xff]
        %v301 = vld [vmem:[%s2 + $0x48] sm:$0xff]
        %v302 = vld [vmem:[%s2 + $0x50] sm:$0xff]
        %v303 = vld [vmem:[%s2 + $0x58] sm:$0xff]
        %v304 = vld [vmem:[%s2 + $0x60] sm:$0xff]
        %v305 = vld [vmem:[%s2 + $0x68] sm:$0xff]
        %v306 = vld [vmem:[%s2 + $0x70] sm:$0xff]
        %v307 = vld [vmem:[%s2 + $0x78] sm:$0xff]
        %v308 = vld [vmem:[%s2 + $0x80] sm:$0xff]
        %v309 = vld [vmem:[%s2 + $0x88] sm:$0xff]
        %v310 = vld [vmem:[%s2 + $0x90] sm:$0xff]
        %v311 = vld [vmem:[%s2 + $0x98] sm:$0xff]
        %v312 = vld [vmem:[%s2 + $0xa0] sm:$0xff]
        %v313 = vld [vmem:[%s2 + $0xa8] sm:$0xff]
        %v314 = vld [vmem:[%s2 + $0xb0] sm:$0xff]
        %v315 = vld [vmem:[%s2 + $0xb8] sm:$0xff]
        %v316 = vld [vmem:[%s2 + $0xc0] sm:$0xff]
        %v317 = vld [vmem:[%s2 + $0xc8] sm:$0xff]
        %v318 = vld [vmem:[%s2 + $0xd0] sm:$0xff]
        %v319 = vld [vmem:[%s2 + $0xd8] sm:$0xff]
        %v320 = vld [vmem:[%s2 + $0xe0] sm:$0xff]
        %v321 = vld [vmem:[%s2 + $0xe8] sm:$0xff]
        %v322 = vld [vmem:[%s2 + $0xf0] sm:$0xff]
        %v323 = vld [vmem:[%s2 + $0xf8] sm:$0xff]
        %325 = vset.pattern.permute.xlu0 0
        %326 = vperm.xlu0 %325, %v292
        %v327 = vpop.permute.xlu0 %326
        %330 = vset.pattern.permute.xlu0 0
        %331 = vperm.xlu0 %330, %v293
        %v332 = vpop.permute.xlu0 %331
        %335 = vset.pattern.permute.xlu0 0
        %336 = vperm.xlu0 %335, %v294
        %v337 = vpop.permute.xlu0 %336
        %340 = vset.pattern.permute.xlu0 0
        %341 = vperm.xlu0 %340, %v295
        %v342 = vpop.permute.xlu0 %341
        %345 = vset.pattern.permute.xlu0 0
        %346 = vperm.xlu0 %345, %v296
        %v347 = vpop.permute.xlu0 %346
        %350 = vset.pattern.permute.xlu0 0
        %351 = vperm.xlu0 %350, %v297
        %v352 = vpop.permute.xlu0 %351
        %355 = vset.pattern.permute.xlu0 0
        %356 = vperm.xlu0 %355, %v298
        %v357 = vpop.permute.xlu0 %356
        %360 = vset.pattern.permute.xlu0 0
        %361 = vperm.xlu0 %360, %v299
        %v362 = vpop.permute.xlu0 %361
        %365 = vset.pattern.permute.xlu0 0
        %366 = vperm.xlu0 %365, %v300
        %v367 = vpop.permute.xlu0 %366
        %370 = vset.pattern.permute.xlu0 0
        %371 = vperm.xlu0 %370, %v301
        %v372 = vpop.permute.xlu0 %371
        %375 = vset.pattern.permute.xlu0 0
        %376 = vperm.xlu0 %375, %v302
        %v377 = vpop.permute.xlu0 %376
        %380 = vset.pattern.permute.xlu0 0
        %381 = vperm.xlu0 %380, %v303
        %v382 = vpop.permute.xlu0 %381
        %385 = vset.pattern.permute.xlu0 0
        %386 = vperm.xlu0 %385, %v304
        %v387 = vpop.permute.xlu0 %386
        %390 = vset.pattern.permute.xlu0 0
        %391 = vperm.xlu0 %390, %v305
        %v392 = vpop.permute.xlu0 %391
        %395 = vset.pattern.permute.xlu0 0
        %396 = vperm.xlu0 %395, %v306
        %v397 = vpop.permute.xlu0 %396
        %400 = vset.pattern.permute.xlu0 0
        %401 = vperm.xlu0 %400, %v307
        %v402 = vpop.permute.xlu0 %401
        %405 = vset.pattern.permute.xlu0 0
        %406 = vperm.xlu0 %405, %v308
        %v407 = vpop.permute.xlu0 %406
        %410 = vset.pattern.permute.xlu0 0
        %411 = vperm.xlu0 %410, %v309
        %v412 = vpop.permute.xlu0 %411
        %415 = vset.pattern.permute.xlu0 0
        %416 = vperm.xlu0 %415, %v310
        %v417 = vpop.permute.xlu0 %416
        %420 = vset.pattern.permute.xlu0 0
        %421 = vperm.xlu0 %420, %v311
        %v422 = vpop.permute.xlu0 %421
        %425 = vset.pattern.permute.xlu0 0
        %426 = vperm.xlu0 %425, %v312
        %v427 = vpop.permute.xlu0 %426
        %430 = vset.pattern.permute.xlu0 0
        %431 = vperm.xlu0 %430, %v313
        %v432 = vpop.permute.xlu0 %431
        %435 = vset.pattern.permute.xlu0 0
        %436 = vperm.xlu0 %435, %v314
        %v437 = vpop.permute.xlu0 %436
        %440 = vset.pattern.permute.xlu0 0
        %441 = vperm.xlu0 %440, %v315
        %v442 = vpop.permute.xlu0 %441
        %445 = vset.pattern.permute.xlu0 0
        %446 = vperm.xlu0 %445, %v316
        %v447 = vpop.permute.xlu0 %446
        %450 = vset.pattern.permute.xlu0 0
        %451 = vperm.xlu0 %450, %v317
        %v452 = vpop.permute.xlu0 %451
        %455 = vset.pattern.permute.xlu0 0
        %456 = vperm.xlu0 %455, %v318
        %v457 = vpop.permute.xlu0 %456
        %460 = vset.pattern.permute.xlu0 0
        %461 = vperm.xlu0 %460, %v319
        %v462 = vpop.permute.xlu0 %461
        %465 = vset.pattern.permute.xlu0 0
        %466 = vperm.xlu0 %465, %v320
        %v467 = vpop.permute.xlu0 %466
        %470 = vset.pattern.permute.xlu0 0
        %471 = vperm.xlu0 %470, %v321
        %v472 = vpop.permute.xlu0 %471
        %475 = vset.pattern.permute.xlu0 0
        %476 = vperm.xlu0 %475, %v322
        %v477 = vpop.permute.xlu0 %476
        %480 = vset.pattern.permute.xlu0 0
        %481 = vperm.xlu0 %480, %v323
        %v482 = vpop.permute.xlu0 %481
        %484 = vmatpush.msra.mxu0 %v290
        %485 = vmatpush.msra.mxu0 %v288
        %486 = vmatpush.msra.mxu0 %v286
        %487 = vmatpush.msra.mxu0 %v284
        %488 = vmatpush.msra.mxu0 %v282
        %489 = vmatpush.msra.mxu0 %v280
        %490 = vmatpush.msra.mxu0 %v278
        %491 = vmatpush.msra.mxu0 %v276
        %492 = vmatpush.msra.mxu0 %v274
        %493 = vmatpush.msra.mxu0 %v272
        %494 = vmatpush.msra.mxu0 %v270
        %495 = vmatpush.msra.mxu0 %v268
        %496 = vmatpush.msra.mxu0 %v266
        %497 = vmatpush.msra.mxu0 %v264
        %498 = vmatpush.msra.mxu0 %v262
        %499 = vmatpush.msra.mxu0 %v260
        %500 = vmatmul.f32.gmra.mxu0 %v228
        %v501 = vpop.f32.mrf.mxu0
        %v502 = vadd.f32 %v327, %v501
        %503 = vmatmul.f32.gmra.mxu0 %v229
        %v504 = vpop.f32.mrf.mxu0
        %v505 = vadd.f32 %v332, %v504
        %506 = vmatmul.f32.gmra.mxu0 %v230
        %v507 = vpop.f32.mrf.mxu0
        %v508 = vadd.f32 %v337, %v507
        %509 = vmatmul.f32.gmra.mxu0 %v231
        %v510 = vpop.f32.mrf.mxu0
        %v511 = vadd.f32 %v342, %v510
        %512 = vmatmul.f32.gmra.mxu0 %v232
        %v513 = vpop.f32.mrf.mxu0
        %v514 = vadd.f32 %v347, %v513
        %515 = vmatmul.f32.gmra.mxu0 %v233
        %v516 = vpop.f32.mrf.mxu0
        %v517 = vadd.f32 %v352, %v516
        %518 = vmatmul.f32.gmra.mxu0 %v234
        %v519 = vpop.f32.mrf.mxu0
        %v520 = vadd.f32 %v357, %v519
        %521 = vmatmul.f32.gmra.mxu0 %v235
        %v522 = vpop.f32.mrf.mxu0
        %v523 = vadd.f32 %v362, %v522
        %524 = vmatmul.f32.gmra.mxu0 %v236
        %v525 = vpop.f32.mrf.mxu0
        %v526 = vadd.f32 %v367, %v525
        %527 = vmatmul.f32.gmra.mxu0 %v237
        %v528 = vpop.f32.mrf.mxu0
        %v529 = vadd.f32 %v372, %v528
        %530 = vmatmul.f32.gmra.mxu0 %v238
        %v531 = vpop.f32.mrf.mxu0
        %v532 = vadd.f32 %v377, %v531
        %533 = vmatmul.f32.gmra.mxu0 %v239
        %v534 = vpop.f32.mrf.mxu0
        %v535 = vadd.f32 %v382, %v534
        %536 = vmatmul.f32.gmra.mxu0 %v240
        %v537 = vpop.f32.mrf.mxu0
        %v538 = vadd.f32 %v387, %v537
        %539 = vmatmul.f32.gmra.mxu0 %v241
        %v540 = vpop.f32.mrf.mxu0
        %v541 = vadd.f32 %v392, %v540
        %542 = vmatmul.f32.gmra.mxu0 %v242
        %v543 = vpop.f32.mrf.mxu0
        %v544 = vadd.f32 %v397, %v543
        %545 = vmatmul.f32.gmra.mxu0 %v243
        %v546 = vpop.f32.mrf.mxu0
        %v547 = vadd.f32 %v402, %v546
        %548 = vmatmul.f32.gmra.mxu0 %v244
        %v549 = vpop.f32.mrf.mxu0
        %v550 = vadd.f32 %v407, %v549
        %551 = vmatmul.f32.gmra.mxu0 %v245
        %v552 = vpop.f32.mrf.mxu0
        %v553 = vadd.f32 %v412, %v552
        %554 = vmatmul.f32.gmra.mxu0 %v246
        %v555 = vpop.f32.mrf.mxu0
        %v556 = vadd.f32 %v417, %v555
        %557 = vmatmul.f32.gmra.mxu0 %v247
        %v558 = vpop.f32.mrf.mxu0
        %v559 = vadd.f32 %v422, %v558
        %560 = vmatmul.f32.gmra.mxu0 %v248
        %v561 = vpop.f32.mrf.mxu0
        %v562 = vadd.f32 %v427, %v561
        %563 = vmatmul.f32.gmra.mxu0 %v249
        %v564 = vpop.f32.mrf.mxu0
        %v565 = vadd.f32 %v432, %v564
        %566 = vmatmul.f32.gmra.mxu0 %v250
        %v567 = vpop.f32.mrf.mxu0
        %v568 = vadd.f32 %v437, %v567
        %569 = vmatmul.f32.gmra.mxu0 %v251
        %v570 = vpop.f32.mrf.mxu0
        %v571 = vadd.f32 %v442, %v570
        %572 = vmatmul.f32.gmra.mxu0 %v252
        %v573 = vpop.f32.mrf.mxu0
        %v574 = vadd.f32 %v447, %v573
        %575 = vmatmul.f32.gmra.mxu0 %v253
        %v576 = vpop.f32.mrf.mxu0
        %v577 = vadd.f32 %v452, %v576
        %578 = vmatmul.f32.gmra.mxu0 %v254
        %v579 = vpop.f32.mrf.mxu0
        %v580 = vadd.f32 %v457, %v579
        %581 = vmatmul.f32.gmra.mxu0 %v255
        %v582 = vpop.f32.mrf.mxu0
        %v583 = vadd.f32 %v462, %v582
        %584 = vmatmul.f32.gmra.mxu0 %v256
        %v585 = vpop.f32.mrf.mxu0
        %v586 = vadd.f32 %v467, %v585
        %587 = vmatmul.f32.gmra.mxu0 %v257
        %v588 = vpop.f32.mrf.mxu0
        %v589 = vadd.f32 %v472, %v588
        %590 = vmatmul.f32.gmra.mxu0 %v258
        %v591 = vpop.f32.mrf.mxu0
        %v592 = vadd.f32 %v477, %v591
        %593 = vmatmul.f32.gmra.mxu0 %v259
        %v594 = vpop.f32.mrf.mxu0
        %v595 = vadd.f32 %v482, %v594
        %596 = vdwg.mxu0
        %597 = vmatpush.msra.mxu0 %v291
        %598 = vmatpush.msra.mxu0 %v289
        %599 = vmatpush.msra.mxu0 %v287
        %600 = vmatpush.msra.mxu0 %v285
        %601 = vmatpush.msra.mxu0 %v283
        %602 = vmatpush.msra.mxu0 %v281
        %603 = vmatpush.msra.mxu0 %v279
        %604 = vmatpush.msra.mxu0 %v277
        %605 = vmatpush.msra.mxu0 %v275
        %606 = vmatpush.msra.mxu0 %v273
        %607 = vmatpush.msra.mxu0 %v271
        %608 = vmatpush.msra.mxu0 %v269
        %609 = vmatpush.msra.mxu0 %v267
        %610 = vmatpush.msra.mxu0 %v265
        %611 = vmatpush.msra.mxu0 %v263
        %612 = vmatpush.msra.mxu0 %v261
        %613 = vmatmul.f32.gmra.mxu0 %v228
        %v614 = vpop.f32.mrf.mxu0
        %v615 = vadd.f32 %v327, %v614
        %616 = vmatmul.f32.gmra.mxu0 %v229
        %v617 = vpop.f32.mrf.mxu0
        %v618 = vadd.f32 %v332, %v617
        %619 = vmatmul.f32.gmra.mxu0 %v230
        %v620 = vpop.f32.mrf.mxu0
        %v621 = vadd.f32 %v337, %v620
        %622 = vmatmul.f32.gmra.mxu0 %v231
        %v623 = vpop.f32.mrf.mxu0
        %v624 = vadd.f32 %v342, %v623
        %625 = vmatmul.f32.gmra.mxu0 %v232
        %v626 = vpop.f32.mrf.mxu0
        %v627 = vadd.f32 %v347, %v626
        %628 = vmatmul.f32.gmra.mxu0 %v233
        %v629 = vpop.f32.mrf.mxu0
        %v630 = vadd.f32 %v352, %v629
        %631 = vmatmul.f32.gmra.mxu0 %v234
        %v632 = vpop.f32.mrf.mxu0
        %v633 = vadd.f32 %v357, %v632
        %634 = vmatmul.f32.gmra.mxu0 %v235
        %v635 = vpop.f32.mrf.mxu0
        %v636 = vadd.f32 %v362, %v635
        %637 = vmatmul.f32.gmra.mxu0 %v236
        %v638 = vpop.f32.mrf.mxu0
        %v639 = vadd.f32 %v367, %v638
        %640 = vmatmul.f32.gmra.mxu0 %v237
        %v641 = vpop.f32.mrf.mxu0
        %v642 = vadd.f32 %v372, %v641
        %643 = vmatmul.f32.gmra.mxu0 %v238
        %v644 = vpop.f32.mrf.mxu0
        %v645 = vadd.f32 %v377, %v644
        %646 = vmatmul.f32.gmra.mxu0 %v239
        %v647 = vpop.f32.mrf.mxu0
        %v648 = vadd.f32 %v382, %v647
        %649 = vmatmul.f32.gmra.mxu0 %v240
        %v650 = vpop.f32.mrf.mxu0
        %v651 = vadd.f32 %v387, %v650
        %652 = vmatmul.f32.gmra.mxu0 %v241
        %v653 = vpop.f32.mrf.mxu0
        %v654 = vadd.f32 %v392, %v653
        %655 = vmatmul.f32.gmra.mxu0 %v242
        %v656 = vpop.f32.mrf.mxu0
        %v657 = vadd.f32 %v397, %v656
        %658 = vmatmul.f32.gmra.mxu0 %v243
        %v659 = vpop.f32.mrf.mxu0
        %v660 = vadd.f32 %v402, %v659
        %661 = vmatmul.f32.gmra.mxu0 %v244
        %v662 = vpop.f32.mrf.mxu0
        %v663 = vadd.f32 %v407, %v662
        %664 = vmatmul.f32.gmra.mxu0 %v245
        %v665 = vpop.f32.mrf.mxu0
        %v666 = vadd.f32 %v412, %v665
        %667 = vmatmul.f32.gmra.mxu0 %v246
        %v668 = vpop.f32.mrf.mxu0
        %v669 = vadd.f32 %v417, %v668
        %670 = vmatmul.f32.gmra.mxu0 %v247
        %v671 = vpop.f32.mrf.mxu0
        %v672 = vadd.f32 %v422, %v671
        %673 = vmatmul.f32.gmra.mxu0 %v248
        %v674 = vpop.f32.mrf.mxu0
        %v675 = vadd.f32 %v427, %v674
        %676 = vmatmul.f32.gmra.mxu0 %v249
        %v677 = vpop.f32.mrf.mxu0
        %v678 = vadd.f32 %v432, %v677
        %679 = vmatmul.f32.gmra.mxu0 %v250
        %v680 = vpop.f32.mrf.mxu0
        %v681 = vadd.f32 %v437, %v680
        %682 = vmatmul.f32.gmra.mxu0 %v251
        %v683 = vpop.f32.mrf.mxu0
        %v684 = vadd.f32 %v442, %v683
        %685 = vmatmul.f32.gmra.mxu0 %v252
        %v686 = vpop.f32.mrf.mxu0
        %v687 = vadd.f32 %v447, %v686
        %688 = vmatmul.f32.gmra.mxu0 %v253
        %v689 = vpop.f32.mrf.mxu0
        %v690 = vadd.f32 %v452, %v689
        %691 = vmatmul.f32.gmra.mxu0 %v254
        %v692 = vpop.f32.mrf.mxu0
        %v693 = vadd.f32 %v457, %v692
        %694 = vmatmul.f32.gmra.mxu0 %v255
        %v695 = vpop.f32.mrf.mxu0
        %v696 = vadd.f32 %v462, %v695
        %697 = vmatmul.f32.gmra.mxu0 %v256
        %v698 = vpop.f32.mrf.mxu0
        %v699 = vadd.f32 %v467, %v698
        %700 = vmatmul.f32.gmra.mxu0 %v257
        %v701 = vpop.f32.mrf.mxu0
        %v702 = vadd.f32 %v472, %v701
        %703 = vmatmul.f32.gmra.mxu0 %v258
        %v704 = vpop.f32.mrf.mxu0
        %v705 = vadd.f32 %v477, %v704
        %706 = vmatmul.f32.gmra.mxu0 %v259
        %v707 = vpop.f32.mrf.mxu0
        %v708 = vadd.f32 %v482, %v707
        %709 = vdwg.mxu0
        %v710 = vmax.f32 %v502, 0.0
        %v711 = vmax.f32 %v615, 0.0
        %v712 = vmax.f32 %v505, 0.0
        %v713 = vmax.f32 %v618, 0.0
        %v714 = vmax.f32 %v508, 0.0
        %v715 = vmax.f32 %v621, 0.0
        %v716 = vmax.f32 %v511, 0.0
        %v717 = vmax.f32 %v624, 0.0
        %v718 = vmax.f32 %v514, 0.0
        %v719 = vmax.f32 %v627, 0.0
        %v720 = vmax.f32 %v517, 0.0
        %v721 = vmax.f32 %v630, 0.0
        %v722 = vmax.f32 %v520, 0.0
        %v723 = vmax.f32 %v633, 0.0
        %v724 = vmax.f32 %v523, 0.0
        %v725 = vmax.f32 %v636, 0.0
        %v726 = vmax.f32 %v526, 0.0
        %v727 = vmax.f32 %v639, 0.0
        %v728 = vmax.f32 %v529, 0.0
        %v729 = vmax.f32 %v642, 0.0
        %v730 = vmax.f32 %v532, 0.0
        %v731 = vmax.f32 %v645, 0.0
        %v732 = vmax.f32 %v535, 0.0
        %v733 = vmax.f32 %v648, 0.0
        %v734 = vmax.f32 %v538, 0.0
        %v735 = vmax.f32 %v651, 0.0
        %v736 = vmax.f32 %v541, 0.0
        %v737 = vmax.f32 %v654, 0.0
        %v738 = vmax.f32 %v544, 0.0
        %v739 = vmax.f32 %v657, 0.0
        %v740 = vmax.f32 %v547, 0.0
        %v741 = vmax.f32 %v660, 0.0
        %v742 = vmax.f32 %v550, 0.0
        %v743 = vmax.f32 %v663, 0.0
        %v744 = vmax.f32 %v553, 0.0
        %v745 = vmax.f32 %v666, 0.0
        %v746 = vmax.f32 %v556, 0.0
        %v747 = vmax.f32 %v669, 0.0
        %v748 = vmax.f32 %v559, 0.0
        %v749 = vmax.f32 %v672, 0.0
        %v750 = vmax.f32 %v562, 0.0
        %v751 = vmax.f32 %v675, 0.0
        %v752 = vmax.f32 %v565, 0.0
        %v753 = vmax.f32 %v678, 0.0
        %v754 = vmax.f32 %v568, 0.0
        %v755 = vmax.f32 %v681, 0.0
        %v756 = vmax.f32 %v571, 0.0
        %v757 = vmax.f32 %v684, 0.0
        %v758 = vmax.f32 %v574, 0.0
        %v759 = vmax.f32 %v687, 0.0
        %v760 = vmax.f32 %v577, 0.0
        %v761 = vmax.f32 %v690, 0.0
        %v762 = vmax.f32 %v580, 0.0
        %v763 = vmax.f32 %v693, 0.0
        %v764 = vmax.f32 %v583, 0.0
        %v765 = vmax.f32 %v696, 0.0
        %v766 = vmax.f32 %v586, 0.0
        %v767 = vmax.f32 %v699, 0.0
        %v768 = vmax.f32 %v589, 0.0
        %v769 = vmax.f32 %v702, 0.0
        %v770 = vmax.f32 %v592, 0.0
        %v771 = vmax.f32 %v705, 0.0
        %v772 = vmax.f32 %v595, 0.0
        %v773 = vmax.f32 %v708, 0.0
        %774 = vst [vmem:[%s225] sm:$0xff] %v710
        %775 = vst [vmem:[%s225 + $0x8] sm:$0xff] %v711
        %776 = vst [vmem:[%s225 + $0x10] sm:$0xff] %v712
        %777 = vst [vmem:[%s225 + $0x18] sm:$0xff] %v713
        %778 = vst [vmem:[%s225 + $0x20] sm:$0xff] %v714
        %779 = vst [vmem:[%s225 + $0x28] sm:$0xff] %v715
        %780 = vst [vmem:[%s225 + $0x30] sm:$0xff] %v716
        %781 = vst [vmem:[%s225 + $0x38] sm:$0xff] %v717
        %782 = vst [vmem:[%s225 + $0x40] sm:$0xff] %v718
        %783 = vst [vmem:[%s225 + $0x48] sm:$0xff] %v719
        %784 = vst [vmem:[%s225 + $0x50] sm:$0xff] %v720
        %785 = vst [vmem:[%s225 + $0x58] sm:$0xff] %v721
        %786 = vst [vmem:[%s225 + $0x60] sm:$0xff] %v722
        %787 = vst [vmem:[%s225 + $0x68] sm:$0xff] %v723
        %788 = vst [vmem:[%s225 + $0x70] sm:$0xff] %v724
        %789 = vst [vmem:[%s225 + $0x78] sm:$0xff] %v725
        %790 = vst [vmem:[%s225 + $0x80] sm:$0xff] %v726
        %791 = vst [vmem:[%s225 + $0x88] sm:$0xff] %v727
        %792 = vst [vmem:[%s225 + $0x90] sm:$0xff] %v728
        %793 = vst [vmem:[%s225 + $0x98] sm:$0xff] %v729
        %794 = vst [vmem:[%s225 + $0xa0] sm:$0xff] %v730
        %795 = vst [vmem:[%s225 + $0xa8] sm:$0xff] %v731
        %796 = vst [vmem:[%s225 + $0xb0] sm:$0xff] %v732
        %797 = vst [vmem:[%s225 + $0xb8] sm:$0xff] %v733
        %798 = vst [vmem:[%s225 + $0xc0] sm:$0xff] %v734
        %799 = vst [vmem:[%s225 + $0xc8] sm:$0xff] %v735
        %800 = vst [vmem:[%s225 + $0xd0] sm:$0xff] %v736
        %801 = vst [vmem:[%s225 + $0xd8] sm:$0xff] %v737
        %802 = vst [vmem:[%s225 + $0xe0] sm:$0xff] %v738
        %803 = vst [vmem:[%s225 + $0xe8] sm:$0xff] %v739
        %804 = vst [vmem:[%s225 + $0xf0] sm:$0xff] %v740
        %805 = vst [vmem:[%s225 + $0xf8] sm:$0xff] %v741
        %806 = vst [vmem:[%s225 + $0x100] sm:$0xff] %v742
        %807 = vst [vmem:[%s225 + $0x108] sm:$0xff] %v743
        %808 = vst [vmem:[%s225 + $0x110] sm:$0xff] %v744
        %809 = vst [vmem:[%s225 + $0x118] sm:$0xff] %v745
        %810 = vst [vmem:[%s225 + $0x120] sm:$0xff] %v746
        %811 = vst [vmem:[%s225 + $0x128] sm:$0xff] %v747
        %812 = vst [vmem:[%s225 + $0x130] sm:$0xff] %v748
        %813 = vst [vmem:[%s225 + $0x138] sm:$0xff] %v749
        %814 = vst [vmem:[%s225 + $0x140] sm:$0xff] %v750
        %815 = vst [vmem:[%s225 + $0x148] sm:$0xff] %v751
        %816 = vst [vmem:[%s225 + $0x150] sm:$0xff] %v752
        %817 = vst [vmem:[%s225 + $0x158] sm:$0xff] %v753
        %818 = vst [vmem:[%s225 + $0x160] sm:$0xff] %v754
        %819 = vst [vmem:[%s225 + $0x168] sm:$0xff] %v755
        %820 = vst [vmem:[%s225 + $0x170] sm:$0xff] %v756
        %821 = vst [vmem:[%s225 + $0x178] sm:$0xff] %v757
        %822 = vst [vmem:[%s225 + $0x180] sm:$0xff] %v758
        %823 = vst [vmem:[%s225 + $0x188] sm:$0xff] %v759
        %824 = vst [vmem:[%s225 + $0x190] sm:$0xff] %v760
        %825 = vst [vmem:[%s225 + $0x198] sm:$0xff] %v761
        %826 = vst [vmem:[%s225 + $0x1a0] sm:$0xff] %v762
        %827 = vst [vmem:[%s225 + $0x1a8] sm:$0xff] %v763
        %828 = vst [vmem:[%s225 + $0x1b0] sm:$0xff] %v764
        %829 = vst [vmem:[%s225 + $0x1b8] sm:$0xff] %v765
        %830 = vst [vmem:[%s225 + $0x1c0] sm:$0xff] %v766
        %831 = vst [vmem:[%s225 + $0x1c8] sm:$0xff] %v767
        %832 = vst [vmem:[%s225 + $0x1d0] sm:$0xff] %v768
        %833 = vst [vmem:[%s225 + $0x1d8] sm:$0xff] %v769
        %834 = vst [vmem:[%s225 + $0x1e0] sm:$0xff] %v770
        %835 = vst [vmem:[%s225 + $0x1e8] sm:$0xff] %v771
        %836 = vst [vmem:[%s225 + $0x1f0] sm:$0xff] %v772
        %837 = vst [vmem:[%s225 + $0x1f8] sm:$0xff] %v773
        %s838 = sand.u32 %s113, 1
        %s839 = scalar_lea.sflag [#allocation4], %s838
        %s840 = sand.u32 %s113, 1
        %s841 = smul.addr %s840, 512
        %s842 = scalar_lea.vmem [#allocation7], %s841
        // Predicated region
        $region41: #{tpu_custom_call.1} parent=31 // pred_check
          %p843 = pneg %p123
        $region42: #{tpu_custom_call.1} parent=31 // pred_check_branch
          %845 = sbr.rel (%p843) target = $region44
        $region43: #{tpu_custom_call.1} parent=31 // pred_region
          %s846 = smul.u32 2, %s26
          %848 = vsyncadd %s839, 0
          %s849 = smul.addr %s25, 256
          %s850 = sadd.s32 %s846, %s849
          %s851 = smul.addr %s850, 8
          %s852 = scalar_lea.hbm %s3, %s851
          %s853 = sshll.u32 %s842, 4
          %s854 = int_to_ptr.vmem [resolvable:$true] %s853
          %s855 = sshll.u32 %s852, 4
          %s856 = int_to_ptr.hbm [resolvable:$true] %s855
          %861 = dma.vmem_to_hbm [thread:$0]  %s854, 8192, %s856, %s839, 256, 1024, 16
        $region44: #{tpu_custom_call.1} parent=31 // pred_fallthru
          _
      $region32: #{tpu_custom_call.1} parent=5 // pred_fallthru
        _
      %p862 = scmp.le.s32.totalorder 2, %s16
      // Predicated region
      $region45: #{tpu_custom_call.1} parent=5 // pred_check
        %p863 = pneg %p862
      $region46: #{tpu_custom_call.1} parent=5 // pred_check_branch
        %865 = sbr.rel (%p863) target = $region48
      $region47: #{tpu_custom_call.1} parent=5 // pred_region
        %s866 = ssub.s32 %s16, 2
        // Predicated region
        $region49: #{tpu_custom_call.1} parent=47 // pred_check
          %p867 = pneg %p129
        $region50: #{tpu_custom_call.1} parent=47 // pred_check_branch
          %869 = sbr.rel (%p867) target = $region52
        $region51: #{tpu_custom_call.1} parent=47 // pred_region
          %s870 = sand.u32 %s114, 1
          %s871 = scalar_lea.sflag [#allocation4], %s870
          %s872 = sand.u32 %s114, 1
          %s873 = smul.addr %s872, 512
          %s874 = scalar_lea.vmem [#allocation7], %s873
          %876 = dma.done %s871, 8192
        $region52: #{tpu_custom_call.1} parent=47 // pred_fallthru
          _
      $region48: #{tpu_custom_call.1} parent=5 // pred_fallthru
        _
    $region6: #{tpu_custom_call.1} parent=1 // loop_footer
      %s20 = sadd.s32 1, %s16
    $region7: #{tpu_custom_call.1} parent=1 // loop_footer_branch
      %15 = sbr.rel target = $region3
    $region8: #{tpu_custom_call.1} parent=1 // loop_exit
      _
    %877 = vsyncpa [#allocation3], 1
    %s878 = scalar_lea.sflag [#allocation3], 1
    %879 = vsyncpa %s878, 1
    %880 = vsyncpa [#allocation6], 1
    %881 = vsyncpa [#allocation4], 1
    %s882 = scalar_lea.sflag [#allocation4], 1
    %883 = vsyncpa %s882, 1

</llo_original>
